<compile_context>
chip_gen: v7x
topology: tpu7x:2x2x1
jax: 0.10.0
libtpu: 0.0.40
codegen_flags: <defaults>
</compile_context>

<pallas_src>
import jax
import jax.numpy as jnp
from jax.experimental import pallas as pl
from jax.experimental.pallas import tpu as pltpu


def _self_attn_kernel(h_ref, w_ref, b_ref, m_ref, o_ref):
    # h_ref: (BB, S, H)   hiddens block
    # w_ref: (H, H)       shared projection weight (VMEM-resident)
    # b_ref: (1, H)       shared query vector      (VMEM-resident)
    # m_ref: (BB, S)      int32 mask (1 = keep, 0 = fill with -1e9)
    # o_ref: (BB, H)      output block (lane-dense in H)
    bb, s, hdim = h_ref.shape

    h = h_ref[...]                                    # (BB, S, H) input dtype
    w = w_ref[...]                                    # (H, H)
    bvec = b_ref[...].astype(jnp.float32)             # (1, H)

    # One fused MXU matmul over all BB*S rows; tanh goes to the EUP slot.
    # S is padded to a multiple of 8 in the wrapper, so these reshapes are
    # tile-aligned layout no-ops.
    t = jnp.tanh(
        jnp.dot(h.reshape(bb * s, hdim), w, preferred_element_type=jnp.float32)
    ).reshape(bb, s, hdim)                            # (BB, S, H) f32

    # logits[b, s] = <tanh(...)[b, s, :], b>  -> lane-dense (BB, S)
    logits = jnp.sum(t * bvec, axis=-1)               # (BB, S) f32

    # masked_fill_(~mask, -1e9); padded S columns carry mask=0.
    m = m_ref[...]                                    # (BB, S) int32
    logits = jnp.where(m != 0, logits, jnp.float32(-1000000000.0))

    # Numerically-stable softmax along the sequence axis (lanes).
    mx = jnp.max(logits, axis=-1, keepdims=True)      # (BB, 1)
    e = jnp.exp(logits - mx)                          # (BB, S)
    denom = jnp.sum(e, axis=-1, keepdims=True)        # (BB, 1)
    inv = pl.reciprocal(denom, approx=True)           # EUP slot (nearly free)
    inv = inv * (2.0 - denom * inv)                   # one Newton step -> f32 exact
    probs = e * inv                                   # (BB, S) f32

    # out[b, :] = sum_s probs[b, s] * hiddens[b, s, :]
    # VPU multiply + XLU sublane reduce (2*BB*S*H flops), accumulated in f32;
    # avoids BB serialized M=1 MXU matmuls and any lossy probs cast.
    h32 = h.astype(jnp.float32)                       # (BB, S, H) f32
    out = jnp.sum(probs[:, :, None] * h32, axis=1)    # (BB, H) f32
    o_ref[...] = out.astype(o_ref.dtype)


def _chip_params():
    """Return (vmem_budget_bytes, vmem_limit_bytes, num_tensorcores)."""
    vmem_cap = 64 * 1024 * 1024                       # conservative default (v7x/TC)
    try:
        vmem_cap = int(getattr(pltpu.get_tpu_info(), "vmem_capacity_bytes",
                               vmem_cap))
    except Exception:
        pass
    if vmem_cap >= 96 * 1024 * 1024:
        # v5e / v6e: 128 MiB VMEM, single TensorCore -> big blocks, no split.
        return 80 * 1024 * 1024, 100 * 1024 * 1024, 1
    # v7x-like: 64 MiB per TC, 2 TensorCores share the batch grid.
    return 28 * 1024 * 1024, 48 * 1024 * 1024, 2


def _choose_block_batch(batch, seq, hidden, itemsize, vmem_budget, num_tc,
                        target_rows=1024):
    """Batch elements per grid step.  Guarantees bb == batch (single block) or
    bb % 8 == 0, so the 2D mask/output tiles stay sublane-aligned."""
    if batch <= 1:
        return 1

    def vmem_need(n):
        n8 = pl.cdiv(n, 8) * 8
        s_lanes = pl.cdiv(seq, 128) * 128
        hid = n * seq * hidden * itemsize             # hiddens block
        msk = n8 * s_lanes * 4                        # int32 mask tile (padded)
        out = n8 * hidden * itemsize                  # output tile
        act = 3 * n * seq * hidden * 4                # f32 matmul + tanh + relayouts
        wgt = 2 * hidden * (hidden + 1) * itemsize    # double-buffered weight/bias
        return 2 * (hid + msk + out) + act + wgt

    # Aim for >= target_rows fused-matmul rows (fills the MXU systolic M dim;
    # 1024 is a multiple of both 128 (v5e) and 256 (v6e/v7x) native sizes).
    bb = min(batch, max(1, pl.cdiv(target_rows, seq)))
    while bb > 1 and vmem_need(bb) > vmem_budget:
        bb = (bb + 1) // 2
    # v7x only: keep >= 2 grid blocks so both TensorCores get work -- but only
    # when the batch is large enough for each block to stay sublane-aligned.
    if num_tc >= 2 and batch >= 16:
        bb = min(bb, batch // 2)
    if bb >= batch:
        return batch                                  # single block == full dim
    return max(8, (bb // 8) * 8)                      # multi-block: multiple of 8


def self_attention(hiddens, w_sa, b, mask):
    """hiddens: (B, S, H); w_sa: (1, H, H); b: (1, 1, H); mask: (B, 1, S) bool.
    Returns (B, 1, H) in hiddens.dtype."""
    B, S, H = hiddens.shape
    dtype = hiddens.dtype
    itemsize = jnp.dtype(dtype).itemsize
    w2d = w_sa.reshape(H, H).astype(dtype)
    b2d = b.reshape(1, H).astype(dtype)

    # Sublane-align the sequence axis so in-kernel reshapes are layout no-ops.
    S_pad = pl.cdiv(S, 8) * 8
    mask2d = mask.reshape(B, S).astype(jnp.int32)     # lane-dense in S
    if S_pad != S:
        hiddens = jnp.pad(hiddens, ((0, 0), (0, S_pad - S), (0, 0)))
        mask2d = jnp.pad(mask2d, ((0, 0), (0, S_pad - S)))  # padded cols masked out

    vmem_budget, vmem_limit, num_tc = _chip_params()
    bb = _choose_block_batch(B, S_pad, H, itemsize, vmem_budget, num_tc)
    num_blocks = pl.cdiv(B, bb)
    if num_tc >= 2 and num_blocks > 1 and num_blocks % 2 == 1:
        num_blocks += 1                               # equal work on both v7x TCs
    B_pad = num_blocks * bb
    if B_pad != B:
        hiddens = jnp.pad(hiddens, ((0, B_pad - B), (0, 0), (0, 0)))
        mask2d = jnp.pad(mask2d, ((0, B_pad - B), (0, 0)))

    grid_spec = pltpu.PrefetchScalarGridSpec(
        num_scalar_prefetch=0,
        grid=(num_blocks,),
        in_specs=[
            pl.BlockSpec((bb, S_pad, H), lambda i: (i, 0, 0)),  # hiddens
            pl.BlockSpec((H, H), lambda i: (0, 0)),             # w_sa (resident)
            pl.BlockSpec((1, H), lambda i: (0, 0)),             # b    (resident)
            pl.BlockSpec((bb, S_pad), lambda i: (i, 0)),        # mask (int32, 2D)
        ],
        out_specs=pl.BlockSpec((bb, H), lambda i: (i, 0)),      # (bb, H) lane-dense
    )

    cost = pl.CostEstimate(
        flops=2 * B_pad * S_pad * H * (H + 2),
        transcendentals=B_pad * S_pad * (H + 1),
        bytes_accessed=(B_pad * S_pad * H + H * H + H + B_pad * H) * itemsize
        + B_pad * S_pad * 4,
    )

    out = pl.pallas_call(
        _self_attn_kernel,
        out_shape=jax.ShapeDtypeStruct((B_pad, H), dtype),
        grid_spec=grid_spec,
        compiler_params=pltpu.CompilerParams(
            dimension_semantics=("parallel",),
            vmem_limit_bytes=vmem_limit,
        ),
        cost_estimate=cost,
    )(hiddens, w2d, b2d, mask2d)
    return out[:B].reshape(B, 1, H)


def _reference(hiddens, w_sa, b, mask):
    # Pure-JAX reference mirroring the PyTorch forward.
    B = hiddens.shape[0]
    w = jnp.broadcast_to(w_sa, (B,) + w_sa.shape[1:])
    bb = jnp.broadcast_to(b, (B,) + b.shape[1:])
    t = jnp.tanh(jnp.einsum("bsh,bhk->bsk", hiddens, w))
    logits = jnp.einsum("boh,bsh->bos", bb, t)          # (B, 1, S)
    logits = jnp.where(mask, logits, jnp.float32(-1e9))
    probs = jax.nn.softmax(logits, axis=-1)
    return jnp.einsum("bos,bsh->boh", probs, hiddens)


if __name__ == "__main__":
    B, S, H = 2, 8, 32
    key = jax.random.PRNGKey(0)
    k_h, k_w, k_b = jax.random.split(key, 3)

    # Deterministic kaiming-normal-style init (fan_in scaling, gain=sqrt(2)).
    hiddens = jax.random.normal(k_h, (B, S, H), dtype=jnp.float32)
    w_sa = jax.random.normal(k_w, (1, H, H), dtype=jnp.float32) * jnp.sqrt(2.0 / (H * H))
    b = jax.random.normal(k_b, (1, 1, H), dtype=jnp.float32) * jnp.sqrt(2.0 / H)

    # Padding-style mask: batch 0 keeps all 8 positions, batch 1 keeps 5.
    lengths = jnp.array([8, 5])
    mask = (jnp.arange(S)[None, :] < lengths[:, None])[:, None, :]  # (B, 1, S) bool

    out = self_attention(hiddens, w_sa, b, mask)
    out = jax.block_until_ready(out)

    ref = _reference(hiddens, w_sa, b, mask)
    assert out.shape == (B, 1, H)
    assert jnp.allclose(out, ref, atol=1e-4, rtol=1e-4)
    print("KERNEL_OK")
</pallas_src>

<mosaic_0001>
module attributes {stable_mosaic.version = 11 : i64} {
  func.func @_self_attn_kernel(%arg0: i32, %arg1: memref<2x8x32xf32, #tpu.memory_space<vmem>>, %arg2: memref<32x32xf32, #tpu.memory_space<vmem>>, %arg3: memref<1x32xf32, #tpu.memory_space<vmem>>, %arg4: memref<2x8xi32, #tpu.memory_space<vmem>>, %arg5: memref<2x32xf32, #tpu.memory_space<vmem>>) attributes {dimension_semantics = [#tpu.dimension_semantics<parallel>], iteration_bounds = array<i64: 1>, scalar_prefetch = 0 : i64, scratch_operands = 0 : i64, tpu.core_type = #tpu.core_type<tc>, window_params = [{transform_indices = @transform_0, window_bounds = array<i64: 2, 8, 32>}, {pipeline_mode = #tpu.pipeline_mode<synchronous>, transform_indices = @transform_1, window_bounds = array<i64: 32, 32>}, {pipeline_mode = #tpu.pipeline_mode<synchronous>, transform_indices = @transform_2, window_bounds = array<i64: 1, 32>}, {transform_indices = @transform_3, window_bounds = array<i64: 2, 8>}, {transform_indices = @transform_4, window_bounds = array<i64: 2, 32>}]} {
    %c0 = arith.constant 0 : index
    %c0_0 = arith.constant 0 : index
    %c0_1 = arith.constant 0 : index
    %0 = vector.load %arg1[%c0, %c0_0, %c0_1] : memref<2x8x32xf32, #tpu.memory_space<vmem>>, vector<2x8x32xf32>
    %c0_2 = arith.constant 0 : index
    %c0_3 = arith.constant 0 : index
    %1 = vector.load %arg2[%c0_2, %c0_3] : memref<32x32xf32, #tpu.memory_space<vmem>>, vector<32x32xf32>
    %c0_4 = arith.constant 0 : index
    %c0_5 = arith.constant 0 : index
    %2 = vector.load %arg3[%c0_4, %c0_5] : memref<1x32xf32, #tpu.memory_space<vmem>>, vector<1x32xf32>
    %3 = vector.shape_cast %0 : vector<2x8x32xf32> to vector<16x32xf32>
    %cst = arith.constant dense<0.000000e+00> : vector<16x32xf32>
    %4 = tpu.matmul %3, %1, %cst {dimension_numbers = #tpu.dot_dimension_numbers<[1], [0], [0], [1], [0, 0, 1, 1], [], []>} : vector<16x32xf32>, vector<32x32xf32>, vector<16x32xf32> -> vector<16x32xf32>
    %5 = math.tanh %4 : vector<16x32xf32>
    %6 = vector.shape_cast %5 : vector<16x32xf32> to vector<2x8x32xf32>
    %7 = vector.shape_cast %2 : vector<1x32xf32> to vector<1x1x32xf32>
    %8 = vector.broadcast %7 : vector<1x1x32xf32> to vector<2x8x32xf32>
    %9 = arith.mulf %6, %8 : vector<2x8x32xf32>
    %cst_6 = arith.constant dense<0.000000e+00> : vector<2x8xf32>
    %10 = vector.multi_reduction <add>, %9, %cst_6 [2] : vector<2x8x32xf32> to vector<2x8xf32>
    %c0_7 = arith.constant 0 : index
    %c0_8 = arith.constant 0 : index
    %11 = vector.load %arg4[%c0_7, %c0_8] : memref<2x8xi32, #tpu.memory_space<vmem>>, vector<2x8xi32>
    %c0_i32 = arith.constant 0 : i32
    %12 = vector.broadcast %c0_i32 : i32 to vector<2x8xi32>
    %13 = arith.cmpi ne, %11, %12 : vector<2x8xi32>
    %cst_9 = arith.constant -1.000000e+09 : f32
    %14 = vector.broadcast %cst_9 : f32 to vector<2x8xf32>
    %15 = arith.select %13, %10, %14 : vector<2x8xi1>, vector<2x8xf32>
    %cst_10 = arith.constant dense<0xFF800000> : vector<2xf32>
    %16 = vector.multi_reduction <maximumf>, %15, %cst_10 [1] : vector<2x8xf32> to vector<2xf32>
    %17 = vector.shape_cast %16 : vector<2xf32> to vector<2x1xf32>
    %18 = vector.broadcast %17 : vector<2x1xf32> to vector<2x8xf32>
    %19 = arith.subf %15, %18 : vector<2x8xf32>
    %20 = math.exp %19 : vector<2x8xf32>
    %cst_11 = arith.constant dense<0.000000e+00> : vector<2xf32>
    %21 = vector.multi_reduction <add>, %20, %cst_11 [1] : vector<2x8xf32> to vector<2xf32>
    %22 = vector.shape_cast %21 : vector<2xf32> to vector<2x1xf32>
    %23 = tpu.reciprocal %22 {approx = true} : vector<2x1xf32> -> vector<2x1xf32>
    %24 = arith.mulf %22, %23 : vector<2x1xf32>
    %cst_12 = arith.constant 2.000000e+00 : f32
    %25 = vector.broadcast %cst_12 : f32 to vector<2x1xf32>
    %26 = arith.subf %25, %24 : vector<2x1xf32>
    %27 = arith.mulf %23, %26 : vector<2x1xf32>
    %28 = vector.broadcast %27 : vector<2x1xf32> to vector<2x8xf32>
    %29 = arith.mulf %20, %28 : vector<2x8xf32>
    %30 = vector.shape_cast %29 : vector<2x8xf32> to vector<2x8x1xf32>
    %31 = vector.broadcast %30 : vector<2x8x1xf32> to vector<2x8x32xf32>
    %32 = arith.mulf %31, %0 : vector<2x8x32xf32>
    %cst_13 = arith.constant dense<0.000000e+00> : vector<2x32xf32>
    %33 = vector.multi_reduction <add>, %32, %cst_13 [1] : vector<2x8x32xf32> to vector<2x32xf32>
    %c0_14 = arith.constant 0 : index
    %c0_15 = arith.constant 0 : index
    %34 = vector.load %arg5[%c0_14, %c0_15] : memref<2x32xf32, #tpu.memory_space<vmem>>, vector<2x32xf32>
    tpu.vector_store %arg5[%c0_14, %c0_15], %33 {strides = array<i32>} : memref<2x32xf32, #tpu.memory_space<vmem>>, vector<2x32xf32>,
    return
  }
  func.func @transform_0(%arg0: i32) -> (i32, i32, i32) {
    %c0_i32 = arith.constant 0 : i32
    %c0_i32_0 = arith.constant 0 : i32
    %c0_i32_1 = arith.constant 0 : i32
    return %arg0, %c0_i32, %c0_i32_0 : i32, i32, i32
  }
  func.func @transform_1(%arg0: i32) -> (i32, i32) {
    %c0_i32 = arith.constant 0 : i32
    %c0_i32_0 = arith.constant 0 : i32
    %c0_i32_1 = arith.constant 0 : i32
    return %c0_i32, %c0_i32_0 : i32, i32
  }
  func.func @transform_2(%arg0: i32) -> (i32, i32) {
    %c0_i32 = arith.constant 0 : i32
    %c0_i32_0 = arith.constant 0 : i32
    %c0_i32_1 = arith.constant 0 : i32
    return %c0_i32, %c0_i32_0 : i32, i32
  }
  func.func @transform_3(%arg0: i32) -> (i32, i32) {
    %c0_i32 = arith.constant 0 : i32
    %c0_i32_0 = arith.constant 0 : i32
    return %arg0, %c0_i32 : i32, i32
  }
  func.func @transform_4(%arg0: i32) -> (i32, i32) {
    %c0_i32 = arith.constant 0 : i32
    %c0_i32_0 = arith.constant 0 : i32
    return %arg0, %c0_i32 : i32, i32
  }
}

</mosaic_0001>

<llo_original>
// kernel: tpu_custom_call.1
$region0: #{tpu_custom_call.1}
  #allocation0 [shape = 'u32[]', space=smem, size = 0x4, offset = 0x4, fixed_abs, tag = 'smem constant byte address 0x4 - core index']
  #allocation1 [shape = 'u32[144,128]{1,0:T(1,128)}', space=vmem, size = 0x12000, scoped, tag = 'internal scratch']
  %s0 = inlined_call_operand.hbm [shape: f32[2,8,32], index: 0, kind: input, shape index: {}]
  %s1 = inlined_call_operand.hbm [shape: f32[32,32], index: 1, kind: input, shape index: {}]
  %s2 = inlined_call_operand.vmem [shape: f32[1,32], index: 2, kind: input, shape index: {}]
  %s3 = inlined_call_operand.vmem [shape: s32[2,8], index: 3, kind: input, shape index: {}]
  %s4 = inlined_call_operand.hbm [shape: f32[2,32], index: 4, kind: output, shape index: {}]
  %s5 = sld [smem:[#allocation0]]
  $region34: #{tpu_custom_call.1} parent=0
    _
  %s7 = ssub.s32 1, %s5
  %s8 = scalar_select 0, %s7, %s5
  $region1: #{tpu_custom_call.1} parent=0
    #allocation2 [shape = 'u8[8192]{0}', space=vmem, size = 0x2000, scoped, tag = 'input window, operand 0, single buffered']
    #allocation3 [shape = 's32[1]{0}', space=sflag, size = 0x4, scoped, tag = 'scoped memory for tpu_custom_call.1']
    #allocation4 [shape = 's32[1]{0}', space=sflag, size = 0x4, scoped, tag = 'scoped memory for tpu_custom_call.1']
    #allocation5 [shape = 'u8[16384]{0}', space=vmem, size = 0x4000, scoped, tag = 'input window, operand 1, single buffered']
    #allocation6 [shape = 's32[1]{0}', space=sflag, size = 0x4, scoped, tag = 'scoped memory for tpu_custom_call.1']
    #allocation7 [shape = 'u8[1024]{0}', space=vmem, size = 0x400, scoped, tag = 'output window, operand 0, single buffered']
    %9 = vsyncpa [#allocation3], 0
    %10 = vsyncpa [#allocation6], 0
    %11 = vsyncpa [#allocation4], 0
    // Predicated region
    $region2: #{tpu_custom_call.1} parent=1 // pred_check
      _
    $region3: #{tpu_custom_call.1} parent=1 // pred_check_branch
      %13 = sbr.rel (0) target = $region5
    $region4: #{tpu_custom_call.1} parent=1 // pred_region
      %s15 = ssub.s32 256, 256
      %16 = vsyncadd [#allocation3], %s15
      %s17 = sshll.u32 [#allocation2], 4
      %s18 = int_to_ptr.vmem [resolvable:$true] %s17
      %23 = dma.hbm_to_vmem [thread:$0]  %s0, 256, %s18, [#allocation3], 128, 128, 8
    $region5: #{tpu_custom_call.1} parent=1 // pred_fallthru
      _
    // Predicated region
    $region6: #{tpu_custom_call.1} parent=1 // pred_check
      _
    $region7: #{tpu_custom_call.1} parent=1 // pred_check_branch
      %25 = sbr.rel (0) target = $region9
    $region8: #{tpu_custom_call.1} parent=1 // pred_region
      %s27 = ssub.s32 512, 512
      %28 = vsyncadd [#allocation6], %s27
      %s29 = sshll.u32 [#allocation5], 4
      %s30 = int_to_ptr.vmem [resolvable:$true] %s29
      %35 = dma.hbm_to_vmem [thread:$0]  %s1, 512, %s30, [#allocation6], 128, 128, 8
    $region9: #{tpu_custom_call.1} parent=1 // pred_fallthru
      _
    // Predicated region
    $region10: #{tpu_custom_call.1} parent=1 // pred_check
      _
    $region11: #{tpu_custom_call.1} parent=1 // pred_check_branch
      %37 = sbr.rel (0) target = $region13
    $region12: #{tpu_custom_call.1} parent=1 // pred_region
      _
    $region13: #{tpu_custom_call.1} parent=1 // pred_fallthru
      _
    // Predicated region
    $region14: #{tpu_custom_call.1} parent=1 // pred_check
      _
    $region15: #{tpu_custom_call.1} parent=1 // pred_check_branch
      %39 = sbr.rel (0) target = $region17
    $region16: #{tpu_custom_call.1} parent=1 // pred_region
      _
    $region17: #{tpu_custom_call.1} parent=1 // pred_fallthru
      _
    // Predicated region
    $region18: #{tpu_custom_call.1} parent=1 // pred_check
      _
    $region19: #{tpu_custom_call.1} parent=1 // pred_check_branch
      %41 = sbr.rel (0) target = $region21
    $region20: #{tpu_custom_call.1} parent=1 // pred_region
      %42 = dma.done [#allocation3], 256
    $region21: #{tpu_custom_call.1} parent=1 // pred_fallthru
      _
    // Predicated region
    $region22: #{tpu_custom_call.1} parent=1 // pred_check
      _
    $region23: #{tpu_custom_call.1} parent=1 // pred_check_branch
      %44 = sbr.rel (0) target = $region25
    $region24: #{tpu_custom_call.1} parent=1 // pred_region
      %45 = dma.done [#allocation6], 512
    $region25: #{tpu_custom_call.1} parent=1 // pred_fallthru
      _
    %v46 = vld [vmem:[#allocation2] sm:$0xff]
    %v47 = vld [vmem:[#allocation2 + $0x8] sm:$0xff]
    %v48 = vld [vmem:[#allocation5] sm:$0xff]
    %v49 = vld [vmem:[#allocation5 + $0x8] sm:$0xff]
    %v50 = vld [vmem:[#allocation5 + $0x10] sm:$0xff]
    %v51 = vld [vmem:[#allocation5 + $0x18] sm:$0xff]
    %v52 = vld [vmem:[%s2] sm:$0x1]
    %vm53 = vcmask 261120
    %v55 = vsel %vm53, %v46, 0
    %v58 = vsel %vm53, %v47, 0
    %60 = vmatprep.subr.mxu0 0.0
    %61 = vmatpush1.msra.mxu0 %v48
    %62 = vmatprep.subr.mxu0 0.0
    %63 = vmatpush1.msra.mxu0 %v49
    %64 = vmatprep.subr.mxu0 0.0
    %65 = vmatpush1.msra.mxu0 %v50
    %66 = vmatprep.subr.mxu0 0.0
    %67 = vmatpush1.msra.mxu0 %v51
    %68 = vmatprep.subr.mxu0 0.0
    %69 = vmatpush1.msra.mxu0 0.0
    %70 = vmatprep.subr.mxu0 0.0
    %71 = vmatpush1.msra.mxu0 0.0
    %72 = vmatprep.subr.mxu0 0.0
    %73 = vmatpush1.msra.mxu0 0.0
    %74 = vmatprep.subr.mxu0 0.0
    %75 = vmatpush1.msra.mxu0 0.0
    %76 = vmatprep.subr.mxu0 0.0
    %77 = vmatpush1.msra.mxu0 0.0
    %78 = vmatprep.subr.mxu0 0.0
    %79 = vmatpush1.msra.mxu0 0.0
    %80 = vmatprep.subr.mxu0 0.0
    %81 = vmatpush1.msra.mxu0 0.0
    %82 = vmatprep.subr.mxu0 0.0
    %83 = vmatpush1.msra.mxu0 0.0
    %84 = vmatprep.subr.mxu0 0.0
    %85 = vmatpush1.msra.mxu0 0.0
    %86 = vmatprep.subr.mxu0 0.0
    %87 = vmatpush1.msra.mxu0 0.0
    %88 = vmatprep.subr.mxu0 0.0
    %89 = vmatpush1.msra.mxu0 0.0
    %90 = vmatprep.subr.mxu0 0.0
    %91 = vmatpush1.msra.mxu0 0.0
    %92 = vmatprep.subr.mxu0 0.0
    %93 = vmatpush1.msra.mxu0 0.0
    %94 = vmatprep.subr.mxu0 0.0
    %95 = vmatpush1.msra.mxu0 0.0
    %96 = vmatprep.subr.mxu0 0.0
    %97 = vmatpush1.msra.mxu0 0.0
    %98 = vmatprep.subr.mxu0 0.0
    %99 = vmatpush1.msra.mxu0 0.0
    %100 = vmatprep.subr.mxu0 0.0
    %101 = vmatpush1.msra.mxu0 0.0
    %102 = vmatprep.subr.mxu0 0.0
    %103 = vmatpush1.msra.mxu0 0.0
    %104 = vmatprep.subr.mxu0 0.0
    %105 = vmatpush1.msra.mxu0 0.0
    %106 = vmatprep.subr.mxu0 0.0
    %107 = vmatpush1.msra.mxu0 0.0
    %108 = vmatprep.subr.mxu0 0.0
    %109 = vmatpush1.msra.mxu0 0.0
    %110 = vmatprep.subr.mxu0 0.0
    %111 = vmatpush1.msra.mxu0 0.0
    %112 = vmatprep.subr.mxu0 0.0
    %113 = vmatpush1.msra.mxu0 0.0
    %114 = vmatprep.subr.mxu0 0.0
    %115 = vmatpush1.msra.mxu0 0.0
    %116 = vmatprep.subr.mxu0 0.0
    %117 = vmatpush1.msra.mxu0 0.0
    %118 = vmatprep.subr.mxu0 0.0
    %119 = vmatpush1.msra.mxu0 0.0
    %120 = vmatprep.subr.mxu0 0.0
    %121 = vmatpush1.msra.mxu0 0.0
    %122 = vmatprep.subr.mxu0 0.0
    %123 = vmatpush1.msra.mxu0 0.0
    %124 = vmatprep.mubr.f32.mxu0 0.0
    %125 = vmatmul.mubr.f32.gmra.mrb[0].mxu0 %v55
    %v126 = vpop.f32.mrb[0].mxu0
    %v127 = vadd.f32 0.0, %v126
    %v128 = vpop.f32.mrb[0].mxu0
    %129 = vmatprep.mubr.f32.mxu0 0.0
    %130 = vmatmul.mubr.f32.gmra.mrb[0].mxu0 %v58
    %v131 = vpop.f32.mrb[0].mxu0
    %v132 = vadd.f32 0.0, %v131
    %v133 = vpop.f32.mrb[0].mxu0
    %134 = vdwg.mxu0
    %v135 = vtanh.pop %v127
    %v136 = vtanh.pop %v132
    %v138 = vlaneseq
    %v139 = vshrl.u32 %v138, 7
    %v140 = vsub.s32 0, %v139
    %v141 = vrot.slane %v52, %v140
    %v143 = vmul.f32 %v135, %v141
    %v144 = vmul.f32 %v136, %v141
    %v145 = vsel %vm53, %v143, 0.0
    %146 = vadd.xlane.f32.xlu0 %v145
    %v147 = vpop.xlane.xlu0 %146
    %v148 = vsel %vm53, %v144, 0.0
    %149 = vadd.xlane.f32.xlu0 %v148
    %v150 = vpop.xlane.xlu0 %149
    %v151 = vld [vmem:[%s3] sm:$0x3]
    %vm152 = vcmp.ne.s32.totalorder %v151, 0
    %v155 = vlaneseq
    %v156 = vand.u32 %v155, 127
    %v157 = vlaneseq
    %v158 = vshrl.u32 %v157, 7
    %v159 = vsub.s32 %v156, %v158
    %v160 = vrot.slane %v147, %v159
    %v161 = vlaneseq
    %v162 = vshrl.u32 %v161, 7
    %v163 = vsub.s32 %v156, %v162
    %v164 = vrot.slane %v150, %v163
    %vm165 = vcmask 1041409
    %v166 = vsel %vm165, %v164, %v160
    %v168 = vsel %vm152, %v166, -1e+09
    %vm169 = vcmask 58368
    %v170 = vsel %vm169, %v168, -inf
    %171 = vmax.xlane.f32.xlu0 %v170
    %v172 = vpop.xlane.xlu0 %171
    %v173 = vsub.f32 %v168, %v172
    %v174 = vmul.f32 %v173, 1.442695
    %v175 = vpow.pop %v174
    %v176 = vsel %vm169, %v175, 0.0
    %177 = vadd.xlane.f32.xlu0 %v176
    %v178 = vpop.xlane.xlu0 %177
    %v179 = vrcp.pop %v178
    %v180 = vmul.f32 %v178, %v179
    %v181 = vsub.f32 2.0, %v180
    %v182 = vmul.f32 %v179, %v181
    %v183 = vmul.f32 %v175, %v182
    %v184 = vlaneseq
    %v185 = vshrl.u32 %v184, 7
    %v186 = vsub.s32 0, %v185
    %v187 = vrot.slane %v183, %v186
    %189 = vbcast.lane.b32.xlu0 %v187, 256
    %v190 = vpop.permute.xlu0 %189
    %v191 = vlaneseq
    %v192 = vshrl.u32 %v191, 7
    %v193 = vsub.s32 1, %v192
    %v194 = vrot.slane %v183, %v193
    %196 = vbcast.lane.b32.xlu0 %v194, 256
    %v197 = vpop.permute.xlu0 %196
    %v198 = vmul.f32 %v190, %v46
    %v199 = vmul.f32 %v197, %v47
    %v200 = vsel %vm53, %v198, 0.0
    %v201 = vrot.slane %v200, 4
    %v202 = vadd.f32 %v200, %v201
    %v203 = vrot.slane %v202, 2
    %v204 = vadd.f32 %v202, %v203
    %v205 = vrot.slane %v204, 1
    %v206 = vadd.f32 %v204, %v205
    %v207 = vsel %vm53, %v199, 0.0
    %v208 = vrot.slane %v207, 4
    %v209 = vadd.f32 %v207, %v208
    %v210 = vrot.slane %v209, 2
    %v211 = vadd.f32 %v209, %v210
    %v212 = vrot.slane %v211, 1
    %v213 = vadd.f32 %v211, %v212
    %v216 = vsel %vm165, %v213, %v206
    %vm218 = vcmask 254976
    %219 = vst.msk [vmem:[#allocation7] sm:$0x3] %vm218, %v216
    // Predicated region
    $region26: #{tpu_custom_call.1} parent=1 // pred_check
      _
    $region27: #{tpu_custom_call.1} parent=1 // pred_check_branch
      %221 = sbr.rel (0) target = $region29
    $region28: #{tpu_custom_call.1} parent=1 // pred_region
      %s223 = ssub.s32 32, 32
      %224 = vsyncadd [#allocation4], %s223
      %s226 = sshll.u32 [#allocation7], 4
      %s227 = int_to_ptr.vmem [resolvable:$true] %s226
      %229 = dma.vmem_to_hbm [thread:$0]  %s227, 32, %s4, [#allocation4]
    $region29: #{tpu_custom_call.1} parent=1 // pred_fallthru
      _
    // Predicated region
    $region30: #{tpu_custom_call.1} parent=1 // pred_check
      _
    $region31: #{tpu_custom_call.1} parent=1 // pred_check_branch
      %231 = sbr.rel (0) target = $region33
    $region32: #{tpu_custom_call.1} parent=1 // pred_region
      %232 = dma.done [#allocation4], 32
    $region33: #{tpu_custom_call.1} parent=1 // pred_fallthru
      _
    %233 = vsyncpa [#allocation3], 1
    %234 = vsyncpa [#allocation6], 1
    %235 = vsyncpa [#allocation4], 1

</llo_original>
